<compile_context>
chip_gen: v6e
topology: v6e:2x2x1
jax: 0.10.0
libtpu: 0.0.40
codegen_flags: <defaults>
</compile_context>

<pallas_src>
import jax
import jax.numpy as jnp
from jax.experimental import pallas as pl
from jax.experimental.pallas import tpu as pltpu


# ---------------------------------------------------------------------------
# Pallas kernels
# ---------------------------------------------------------------------------

def _gcn_layer_kernel(x_ref, a_ref, wc_ref, bc_ref, bias_ref, o_ref, acc_ref):
    """Fused GCN layer:  relu( Â @ (x @ W_c + b_c) + bias ).

    Grid: (dst row block i [parallel], src block k [arbitrary/reduction]).
    """
    k = pl.program_id(1)

    @pl.when(k == 0)
    def _():
        acc_ref[...] = jnp.zeros_like(acc_ref)

    # Dense per-node transform for this src block (folded fc + channel weights).
    # Recomputed per dst block; extra cost is only ~F/tm of the adjacency matmul.
    h = jnp.dot(x_ref[...], wc_ref[...], preferred_element_type=jnp.float32)
    h = h + bc_ref[...]

    # Weighted, degree-normalized adjacency contraction:
    # bf16 operands into the MXU, f32 accumulation.
    acc_ref[...] += jnp.dot(a_ref[...], h.astype(jnp.bfloat16),
                            preferred_element_type=jnp.float32)

    @pl.when(k == pl.num_programs(1) - 1)
    def _():
        o_ref[...] = jnp.maximum(acc_ref[...] + bias_ref[...], 0.0)


def _make_out_mlp_kernel(num_layers):
    """out_mlp over the implicit concat of the per-layer outputs:
       concat(h_1, ..., h_L) @ W + b  ==  sum_l h_l @ W_l + b."""
    def kernel(*refs):
        xs = refs[:num_layers]
        ws = refs[num_layers:2 * num_layers]
        b_ref = refs[2 * num_layers]
        o_ref = refs[2 * num_layers + 1]
        acc = jnp.dot(xs[0][...], ws[0][...], preferred_element_type=jnp.float32)
        for x_ref, w_ref in zip(xs[1:], ws[1:]):
            acc = acc + jnp.dot(x_ref[...], w_ref[...],
                                preferred_element_type=jnp.float32)
        o_ref[...] = acc + b_ref[...]
    return kernel


# ---------------------------------------------------------------------------
# Wrappers
# ---------------------------------------------------------------------------

def _pick_tile(n, cap):
    """Largest divisor of n that is <= cap and a multiple of 8 (else n)."""
    if n <= cap:
        return n
    for t in range(cap, 7, -1):
        if n % t == 0 and t % 8 == 0:
            return t
    return n


def gcn_layer(x, adj_hat, w_c, b_c, bias_flat, *, tm=None, tk=None):
    N, F = x.shape
    tm = tm or _pick_tile(N, 256)   # dst rows per block
    tk = tk or _pick_tile(N, 512)   # src cols per block
    grid = (N // tm, N // tk)
    n_dst_blocks = grid[0]

    cost = pl.CostEstimate(
        flops=2 * N * N * F + 2 * n_dst_blocks * N * F * F,
        transcendentals=0,
        bytes_accessed=(N * N * 2                      # Â (bf16)
                        + n_dst_blocks * N * F * 4     # x re-read per dst block
                        + N * F * 4                    # output
                        + (F * F + 2 * F) * 4),        # weights / biases
    )

    return pl.pallas_call(
        _gcn_layer_kernel,
        out_shape=jax.ShapeDtypeStruct((N, F), jnp.float32),
        grid_spec=pltpu.PrefetchScalarGridSpec(
            num_scalar_prefetch=0,
            grid=grid,
            in_specs=[
                pl.BlockSpec((tk, F), lambda i, k: (k, 0)),    # x   (src block)
                pl.BlockSpec((tm, tk), lambda i, k: (i, k)),   # Â   tile
                pl.BlockSpec((F, F), lambda i, k: (0, 0)),     # W_c (folded)
                pl.BlockSpec((1, F), lambda i, k: (0, 0)),     # b_c (folded)
                pl.BlockSpec((1, F), lambda i, k: (0, 0)),     # channel bias
            ],
            out_specs=pl.BlockSpec((tm, F), lambda i, k: (i, 0)),
            scratch_shapes=[pltpu.VMEM((tm, F), jnp.float32)],
        ),
        compiler_params=pltpu.CompilerParams(
            dimension_semantics=("parallel", "arbitrary"),
            vmem_limit_bytes=48 * 1024 * 1024,
        ),
        cost_estimate=cost,
    )(x, adj_hat, w_c, b_c, bias_flat)


def out_mlp(layer_outs, w_chunks, b, *, tm=None):
    N, F = layer_outs[0].shape
    out_dim = w_chunks[0].shape[1]
    num_layers = len(layer_outs)
    tm = tm or _pick_tile(N, 512)
    grid = (N // tm,)

    in_specs = ([pl.BlockSpec((tm, F), lambda i: (i, 0)) for _ in range(num_layers)]
                + [pl.BlockSpec((F, out_dim), lambda i: (0, 0)) for _ in range(num_layers)]
                + [pl.BlockSpec((1, out_dim), lambda i: (0, 0))])

    return pl.pallas_call(
        _make_out_mlp_kernel(num_layers),
        out_shape=jax.ShapeDtypeStruct((N, out_dim), jnp.float32),
        grid_spec=pltpu.PrefetchScalarGridSpec(
            num_scalar_prefetch=0,
            grid=grid,
            in_specs=in_specs,
            out_specs=pl.BlockSpec((tm, out_dim), lambda i: (i, 0)),
        ),
        compiler_params=pltpu.CompilerParams(
            dimension_semantics=("parallel",),
            vmem_limit_bytes=48 * 1024 * 1024,
        ),
    )(*layer_outs, *w_chunks, b)


# ---------------------------------------------------------------------------
# Model: deterministic parameter construction + forward
# ---------------------------------------------------------------------------

def xavier(key, shape, gain):
    fan_in, fan_out = shape[-2], shape[-1]
    bound = gain * (6.0 / (fan_in + fan_out)) ** 0.5
    return jax.random.uniform(key, shape, jnp.float32, -bound, bound)


def build_gcn_params(key, in_dim, out_dim, num_layers, num_channels):
    d = out_dim // num_channels           # per-channel out_dim of each GCNLayer
    gain = 2.0 ** 0.5                     # nn.init.calculate_gain('relu')
    layers = []
    for _ in range(num_layers):
        key, k1, k2, k3, k4 = jax.random.split(key, 5)
        w_fc = xavier(k1, (in_dim, in_dim), 1.0)        # right-mult Linear(in, in)
        b_fc = xavier(k2, (1, in_dim), 1.0)
        w_ch = xavier(k3, (num_channels, d, d), gain)   # self._weight [C, D, D]
        bias = xavier(k4, (num_channels, d), gain)      # self._bias   [C, D]
        # One-time host-side fold: per-channel einsum == block-diag right-mult,
        # and it commutes with the src-degree row scale.
        w_blk = jax.scipy.linalg.block_diag(*[w_ch[c] for c in range(num_channels)])
        layers.append(dict(
            w_c=jnp.dot(w_fc, w_blk),                   # [F, F]
            b_c=jnp.dot(b_fc, w_blk),                   # [1, F]
            bias=bias.reshape(1, num_channels * d),     # [1, F]
        ))
    key, k5, k6 = jax.random.split(key, 3)
    w_mlp = xavier(k5, (num_layers * out_dim, out_dim), 1.0)
    b_mlp = xavier(k6, (1, out_dim), 1.0)
    w_mlp_chunks = [w_mlp[l * out_dim:(l + 1) * out_dim] for l in range(num_layers)]
    return dict(layers=layers, w_mlp_chunks=w_mlp_chunks, b_mlp=b_mlp)


def gcn_forward(params, features, adj_hat):
    x = features
    layer_outs = []
    for lp in params["layers"]:
        x = gcn_layer(x, adj_hat, lp["w_c"], lp["b_c"], lp["bias"])
        # torch channel-concat == flatten of [N, C, D] -> [N, C*D]; already flat.
        layer_outs.append(x)
    # Final Linear consumes per-layer outputs directly (no jnp.concatenate).
    h = out_mlp(layer_outs, params["w_mlp_chunks"], params["b_mlp"])
    # TODO(synk): F.dropout skipped (eval-mode / identity); training-mode RNG not reproduced.
    return h


# ---------------------------------------------------------------------------
# Demo
# ---------------------------------------------------------------------------

if __name__ == "__main__":
    in_dim = 32
    out_dim = 32          # must equal in_dim so layers stack (as in the torch module)
    num_channels = 4
    num_layers = 2
    N = 128               # batch_size * snp * num_node flattened node count

    key = jax.random.PRNGKey(0)
    key, kf, ks, kw, kp = jax.random.split(key, 5)

    features = jax.random.normal(kf, (N, in_dim), jnp.float32)

    # synthetic graph: random sparse structure + positive edge weights 'w'
    struct = (jax.random.uniform(ks, (N, N)) < 0.1).astype(jnp.float32)   # [dst, src]
    weights = jax.random.uniform(kw, (N, N), jnp.float32, 0.5, 1.5)
    adj = struct * weights                                                # A[v, u] = w(u->v)

    out_deg = jnp.clip(jnp.sum(struct, axis=0), 1.0)    # out-degree of each src node
    in_deg = jnp.clip(jnp.sum(struct, axis=1), 1.0)     # in-degree of each dst node
    norm_src = out_deg ** -0.5
    norm_dst = in_deg ** -0.5
    # Fold both degree norms into the adjacency once; bf16 for the HBM-bound operand.
    adj_hat = (norm_dst[:, None] * adj * norm_src[None, :]).astype(jnp.bfloat16)

    params = build_gcn_params(kp, in_dim, out_dim, num_layers, num_channels)

    out = gcn_forward(params, features, adj_hat)
    jax.block_until_ready(out)
    assert out.shape == (N, out_dim) and out.dtype == jnp.float32
    print("KERNEL_OK")
</pallas_src>

<mosaic_0001>
module attributes {stable_mosaic.version = 11 : i64} {
  func.func @_gcn_layer_kernel(%arg0: i32, %arg1: i32, %arg2: memref<128x32xf32, #tpu.memory_space<vmem>>, %arg3: memref<128x128xbf16, #tpu.memory_space<vmem>>, %arg4: memref<32x32xf32, #tpu.memory_space<vmem>>, %arg5: memref<1x32xf32, #tpu.memory_space<vmem>>, %arg6: memref<1x32xf32, #tpu.memory_space<vmem>>, %arg7: memref<128x32xf32, #tpu.memory_space<vmem>>, %arg8: memref<128x32xf32, #tpu.memory_space<vmem>>) attributes {dimension_semantics = [#tpu.dimension_semantics<parallel>, #tpu.dimension_semantics<arbitrary>], iteration_bounds = array<i64: 1, 1>, scalar_prefetch = 0 : i64, scratch_operands = 1 : i64, tpu.core_type = #tpu.core_type<tc>, window_params = [{transform_indices = @transform_0, window_bounds = array<i64: 128, 32>}, {transform_indices = @transform_1, window_bounds = array<i64: 128, 128>}, {pipeline_mode = #tpu.pipeline_mode<synchronous>, transform_indices = @transform_2, window_bounds = array<i64: 32, 32>}, {pipeline_mode = #tpu.pipeline_mode<synchronous>, transform_indices = @transform_3, window_bounds = array<i64: 1, 32>}, {pipeline_mode = #tpu.pipeline_mode<synchronous>, transform_indices = @transform_4, window_bounds = array<i64: 1, 32>}, {transform_indices = @transform_5, window_bounds = array<i64: 128, 32>}]} {
    %c0_i32 = arith.constant 0 : i32
    %0 = arith.cmpi eq, %arg1, %c0_i32 : i32
    %1 = arith.extui %0 : i1 to i32
    %c0_i32_0 = arith.constant 0 : i32
    %2 = arith.cmpi ne, %1, %c0_i32_0 : i32
    scf.if %2 {
      %cst_15 = arith.constant 0.000000e+00 : f32
      %18 = vector.broadcast %cst_15 : f32 to vector<128x32xf32>
      %c0_16 = arith.constant 0 : index
      %c0_17 = arith.constant 0 : index
      %19 = vector.load %arg8[%c0_16, %c0_17] : memref<128x32xf32, #tpu.memory_space<vmem>>, vector<128x32xf32>
      tpu.vector_store %arg8[%c0_16, %c0_17], %18 {strides = array<i32>} : memref<128x32xf32, #tpu.memory_space<vmem>>, vector<128x32xf32>,
    } else {
    }
    %c0 = arith.constant 0 : index
    %c0_1 = arith.constant 0 : index
    %3 = vector.load %arg2[%c0, %c0_1] : memref<128x32xf32, #tpu.memory_space<vmem>>, vector<128x32xf32>
    %c0_2 = arith.constant 0 : index
    %c0_3 = arith.constant 0 : index
    %4 = vector.load %arg4[%c0_2, %c0_3] : memref<32x32xf32, #tpu.memory_space<vmem>>, vector<32x32xf32>
    %cst = arith.constant dense<0.000000e+00> : vector<128x32xf32>
    %5 = tpu.matmul %3, %4, %cst {dimension_numbers = #tpu.dot_dimension_numbers<[1], [0], [0], [1], [0, 0, 1, 1], [], []>} : vector<128x32xf32>, vector<32x32xf32>, vector<128x32xf32> -> vector<128x32xf32>
    %c0_4 = arith.constant 0 : index
    %c0_5 = arith.constant 0 : index
    %6 = vector.load %arg5[%c0_4, %c0_5] : memref<1x32xf32, #tpu.memory_space<vmem>>, vector<1x32xf32>
    %7 = vector.broadcast %6 : vector<1x32xf32> to vector<128x32xf32>
    %8 = arith.addf %5, %7 : vector<128x32xf32>
    %c0_6 = arith.constant 0 : index
    %c0_7 = arith.constant 0 : index
    %9 = vector.load %arg8[%c0_6, %c0_7] : memref<128x32xf32, #tpu.memory_space<vmem>>, vector<128x32xf32>
    %c0_8 = arith.constant 0 : index
    %c0_9 = arith.constant 0 : index
    %10 = vector.load %arg3[%c0_8, %c0_9] : memref<128x128xbf16, #tpu.memory_space<vmem>>, vector<128x128xbf16>
    %11 = arith.truncf %8 : vector<128x32xf32> to vector<128x32xbf16>
    %cst_10 = arith.constant dense<0.000000e+00> : vector<128x32xf32>
    %12 = tpu.matmul %10, %11, %cst_10 {dimension_numbers = #tpu.dot_dimension_numbers<[1], [0], [0], [1], [0, 0, 1, 1], [], []>} : vector<128x128xbf16>, vector<128x32xbf16>, vector<128x32xf32> -> vector<128x32xf32>
    %13 = arith.addf %9, %12 : vector<128x32xf32>
    %c0_11 = arith.constant 0 : index
    %c0_12 = arith.constant 0 : index
    %14 = vector.load %arg8[%c0_11, %c0_12] : memref<128x32xf32, #tpu.memory_space<vmem>>, vector<128x32xf32>
    tpu.vector_store %arg8[%c0_11, %c0_12], %13 {strides = array<i32>} : memref<128x32xf32, #tpu.memory_space<vmem>>, vector<128x32xf32>,
    %c0_i32_13 = arith.constant 0 : i32
    %15 = arith.cmpi eq, %arg1, %c0_i32_13 : i32
    %16 = arith.extui %15 : i1 to i32
    %c0_i32_14 = arith.constant 0 : i32
    %17 = arith.cmpi ne, %16, %c0_i32_14 : i32
    scf.if %17 {
      %c0_15 = arith.constant 0 : index
      %c0_16 = arith.constant 0 : index
      %18 = vector.load %arg8[%c0_15, %c0_16] : memref<128x32xf32, #tpu.memory_space<vmem>>, vector<128x32xf32>
      %c0_17 = arith.constant 0 : index
      %c0_18 = arith.constant 0 : index
      %19 = vector.load %arg6[%c0_17, %c0_18] : memref<1x32xf32, #tpu.memory_space<vmem>>, vector<1x32xf32>
      %20 = vector.broadcast %19 : vector<1x32xf32> to vector<128x32xf32>
      %21 = arith.addf %18, %20 : vector<128x32xf32>
      %cst_19 = arith.constant 0.000000e+00 : f32
      %22 = vector.broadcast %cst_19 : f32 to vector<128x32xf32>
      %23 = arith.maximumf %21, %22 : vector<128x32xf32>
      %c0_20 = arith.constant 0 : index
      %c0_21 = arith.constant 0 : index
      %24 = vector.load %arg7[%c0_20, %c0_21] : memref<128x32xf32, #tpu.memory_space<vmem>>, vector<128x32xf32>
      tpu.vector_store %arg7[%c0_20, %c0_21], %23 {strides = array<i32>} : memref<128x32xf32, #tpu.memory_space<vmem>>, vector<128x32xf32>,
    } else {
    }
    return
  }
  func.func @transform_0(%arg0: i32, %arg1: i32) -> (i32, i32) {
    %c0_i32 = arith.constant 0 : i32
    %c0_i32_0 = arith.constant 0 : i32
    return %arg1, %c0_i32 : i32, i32
  }
  func.func @transform_1(%arg0: i32, %arg1: i32) -> (i32, i32) {
    %c0_i32 = arith.constant 0 : i32
    return %arg0, %arg1 : i32, i32
  }
  func.func @transform_2(%arg0: i32, %arg1: i32) -> (i32, i32) {
    %c0_i32 = arith.constant 0 : i32
    %c0_i32_0 = arith.constant 0 : i32
    %c0_i32_1 = arith.constant 0 : i32
    return %c0_i32, %c0_i32_0 : i32, i32
  }
  func.func @transform_3(%arg0: i32, %arg1: i32) -> (i32, i32) {
    %c0_i32 = arith.constant 0 : i32
    %c0_i32_0 = arith.constant 0 : i32
    %c0_i32_1 = arith.constant 0 : i32
    return %c0_i32, %c0_i32_0 : i32, i32
  }
  func.func @transform_4(%arg0: i32, %arg1: i32) -> (i32, i32) {
    %c0_i32 = arith.constant 0 : i32
    %c0_i32_0 = arith.constant 0 : i32
    %c0_i32_1 = arith.constant 0 : i32
    return %c0_i32, %c0_i32_0 : i32, i32
  }
  func.func @transform_5(%arg0: i32, %arg1: i32) -> (i32, i32) {
    %c0_i32 = arith.constant 0 : i32
    %c0_i32_0 = arith.constant 0 : i32
    return %arg0, %c0_i32 : i32, i32
  }
}

</mosaic_0001>

<llo_original>
// kernel: tpu_custom_call.1
$region0: #{tpu_custom_call.1}
  #allocation0 [shape = 'u32[]', space=smem, size = 0x4, offset = 0x4, fixed_abs, tag = 'smem constant byte address 0x4 - core index']
  #allocation1 [shape = 'u32[144,128]{1,0:T(1,128)}', space=vmem, size = 0x12000, scoped, tag = 'internal scratch']
  #allocation2 [shape = 'f32[128,32]{1,0:T(8,128)}', space=vmem, size = 0x10000, scoped, tag = 'scratch operand']
  %s0 = inlined_call_operand.vmem [shape: f32[128,32], index: 0, kind: input, shape index: {}]
  %s1 = inlined_call_operand.vmem [shape: bf16[128,128], index: 1, kind: input, shape index: {}]
  %s2 = inlined_call_operand.vmem [shape: f32[32,32], index: 2, kind: input, shape index: {}]
  %s3 = inlined_call_operand.vmem [shape: f32[1,32], index: 3, kind: input, shape index: {}]
  %s4 = inlined_call_operand.vmem [shape: f32[1,32], index: 4, kind: input, shape index: {}]
  %s5 = inlined_call_operand.vmem [shape: f32[128,32], index: 5, kind: output, shape index: {}]
  %s6 = sld [smem:[#allocation0]]
  $region38: #{tpu_custom_call.1} parent=0
    _
  %s8 = ssub.s32 1, %s6
  %s9 = scalar_select 0, %s8, %s6
  // Predicated region
  $region2: #{tpu_custom_call.1} parent=0 // pred_check
    _
  $region3: #{tpu_custom_call.1} parent=0 // pred_check_branch
    %11 = sbr.rel (0) target = $region5
  $region4: #{tpu_custom_call.1} parent=0 // pred_region
    _
  $region5: #{tpu_custom_call.1} parent=0 // pred_fallthru
    _
  // Predicated region
  $region6: #{tpu_custom_call.1} parent=0 // pred_check
    _
  $region7: #{tpu_custom_call.1} parent=0 // pred_check_branch
    %13 = sbr.rel (0) target = $region9
  $region8: #{tpu_custom_call.1} parent=0 // pred_region
    _
  $region9: #{tpu_custom_call.1} parent=0 // pred_fallthru
    _
  // Predicated region
  $region10: #{tpu_custom_call.1} parent=0 // pred_check
    _
  $region11: #{tpu_custom_call.1} parent=0 // pred_check_branch
    %15 = sbr.rel (0) target = $region13
  $region12: #{tpu_custom_call.1} parent=0 // pred_region
    _
  $region13: #{tpu_custom_call.1} parent=0 // pred_fallthru
    _
  // Predicated region
  $region14: #{tpu_custom_call.1} parent=0 // pred_check
    _
  $region15: #{tpu_custom_call.1} parent=0 // pred_check_branch
    %17 = sbr.rel (0) target = $region17
  $region16: #{tpu_custom_call.1} parent=0 // pred_region
    _
  $region17: #{tpu_custom_call.1} parent=0 // pred_fallthru
    _
  // Predicated region
  $region18: #{tpu_custom_call.1} parent=0 // pred_check
    _
  $region19: #{tpu_custom_call.1} parent=0 // pred_check_branch
    %19 = sbr.rel (0) target = $region21
  $region20: #{tpu_custom_call.1} parent=0 // pred_region
    _
  $region21: #{tpu_custom_call.1} parent=0 // pred_fallthru
    _
  %p21 = scmp.eq.s32.totalorder 0, 0
  // Predicated region
  $region22: #{tpu_custom_call.1} parent=0 // pred_check
    %p22 = pneg %p21
  $region23: #{tpu_custom_call.1} parent=0 // pred_check_branch
    %24 = sbr.rel (%p22) target = $region25
  $region24: #{tpu_custom_call.1} parent=0 // pred_region
    %vm25 = vcmask 261120
    %26 = vst.msk [vmem:[#allocation2] sm:$0xff] %vm25, 0.0
    %27 = vst.msk [vmem:[#allocation2 + $0x8] sm:$0xff] %vm25, 0.0
    %28 = vst.msk [vmem:[#allocation2 + $0x10] sm:$0xff] %vm25, 0.0
    %29 = vst.msk [vmem:[#allocation2 + $0x18] sm:$0xff] %vm25, 0.0
    %30 = vst.msk [vmem:[#allocation2 + $0x20] sm:$0xff] %vm25, 0.0
    %31 = vst.msk [vmem:[#allocation2 + $0x28] sm:$0xff] %vm25, 0.0
    %32 = vst.msk [vmem:[#allocation2 + $0x30] sm:$0xff] %vm25, 0.0
    %33 = vst.msk [vmem:[#allocation2 + $0x38] sm:$0xff] %vm25, 0.0
    %34 = vst.msk [vmem:[#allocation2 + $0x40] sm:$0xff] %vm25, 0.0
    %35 = vst.msk [vmem:[#allocation2 + $0x48] sm:$0xff] %vm25, 0.0
    %36 = vst.msk [vmem:[#allocation2 + $0x50] sm:$0xff] %vm25, 0.0
    %37 = vst.msk [vmem:[#allocation2 + $0x58] sm:$0xff] %vm25, 0.0
    %38 = vst.msk [vmem:[#allocation2 + $0x60] sm:$0xff] %vm25, 0.0
    %39 = vst.msk [vmem:[#allocation2 + $0x68] sm:$0xff] %vm25, 0.0
    %40 = vst.msk [vmem:[#allocation2 + $0x70] sm:$0xff] %vm25, 0.0
    %41 = vst.msk [vmem:[#allocation2 + $0x78] sm:$0xff] %vm25, 0.0
  $region25: #{tpu_custom_call.1} parent=0 // pred_fallthru
    _
  %v42 = vld [vmem:[%s0] sm:$0xff]
  %v43 = vld [vmem:[%s0 + $0x8] sm:$0xff]
  %v44 = vld [vmem:[%s0 + $0x10] sm:$0xff]
  %v45 = vld [vmem:[%s0 + $0x18] sm:$0xff]
  %v46 = vld [vmem:[%s0 + $0x20] sm:$0xff]
  %v47 = vld [vmem:[%s0 + $0x28] sm:$0xff]
  %v48 = vld [vmem:[%s0 + $0x30] sm:$0xff]
  %v49 = vld [vmem:[%s0 + $0x38] sm:$0xff]
  %v50 = vld [vmem:[%s0 + $0x40] sm:$0xff]
  %v51 = vld [vmem:[%s0 + $0x48] sm:$0xff]
  %v52 = vld [vmem:[%s0 + $0x50] sm:$0xff]
  %v53 = vld [vmem:[%s0 + $0x58] sm:$0xff]
  %v54 = vld [vmem:[%s0 + $0x60] sm:$0xff]
  %v55 = vld [vmem:[%s0 + $0x68] sm:$0xff]
  %v56 = vld [vmem:[%s0 + $0x70] sm:$0xff]
  %v57 = vld [vmem:[%s0 + $0x78] sm:$0xff]
  %v58 = vld [vmem:[%s2] sm:$0xff]
  %v59 = vld [vmem:[%s2 + $0x8] sm:$0xff]
  %v60 = vld [vmem:[%s2 + $0x10] sm:$0xff]
  %v61 = vld [vmem:[%s2 + $0x18] sm:$0xff]
  %v62 = vld [vmem:[%s3] sm:$0x1]
  %v64 = vlaneseq
  %v65 = vshrl.u32 %v64, 7
  %v66 = vsub.s32 0, %v65
  %v67 = vrot.slane %v62, %v66
  %vm69 = vcmask 261120
  %v71 = vsel %vm69, %v42, 0
  %v74 = vsel %vm69, %v43, 0
  %v77 = vsel %vm69, %v44, 0
  %v80 = vsel %vm69, %v45, 0
  %v83 = vsel %vm69, %v46, 0
  %v86 = vsel %vm69, %v47, 0
  %v89 = vsel %vm69, %v48, 0
  %v92 = vsel %vm69, %v49, 0
  %v95 = vsel %vm69, %v50, 0
  %v98 = vsel %vm69, %v51, 0
  %v101 = vsel %vm69, %v52, 0
  %v104 = vsel %vm69, %v53, 0
  %v107 = vsel %vm69, %v54, 0
  %v110 = vsel %vm69, %v55, 0
  %v113 = vsel %vm69, %v56, 0
  %v116 = vsel %vm69, %v57, 0
  %118 = vmatprep.subr.mxu0 0.0
  %119 = vmatpush1.msra.mxu0 0.0
  %120 = vmatprep.subr.mxu0 0.0
  %121 = vmatpush1.msra.mxu0 0.0
  %122 = vmatprep.subr.mxu0 0.0
  %123 = vmatpush1.msra.mxu0 0.0
  %124 = vmatprep.subr.mxu0 0.0
  %125 = vmatpush1.msra.mxu0 0.0
  %126 = vmatprep.subr.mxu0 0.0
  %127 = vmatpush1.msra.mxu0 0.0
  %128 = vmatprep.subr.mxu0 0.0
  %129 = vmatpush1.msra.mxu0 0.0
  %130 = vmatprep.subr.mxu0 0.0
  %131 = vmatpush1.msra.mxu0 0.0
  %132 = vmatprep.subr.mxu0 0.0
  %133 = vmatpush1.msra.mxu0 0.0
  %134 = vmatprep.subr.mxu0 0.0
  %135 = vmatpush1.msra.mxu0 0.0
  %136 = vmatprep.subr.mxu0 0.0
  %137 = vmatpush1.msra.mxu0 0.0
  %138 = vmatprep.subr.mxu0 0.0
  %139 = vmatpush1.msra.mxu0 0.0
  %140 = vmatprep.subr.mxu0 0.0
  %141 = vmatpush1.msra.mxu0 0.0
  %142 = vmatprep.subr.mxu0 0.0
  %143 = vmatpush1.msra.mxu0 %v61
  %144 = vmatprep.subr.mxu0 0.0
  %145 = vmatpush1.msra.mxu0 %v60
  %146 = vmatprep.subr.mxu0 0.0
  %147 = vmatpush1.msra.mxu0 %v59
  %148 = vmatprep.subr.mxu0 0.0
  %149 = vmatpush1.msra.mxu0 %v58
  %150 = vmatprep.subr.mxu0 0.0
  %151 = vmatpush2.msra.mxu0 0.0
  %152 = vmatprep.subr.mxu0 0.0
  %153 = vmatpush2.msra.mxu0 0.0
  %154 = vmatprep.subr.mxu0 0.0
  %155 = vmatpush2.msra.mxu0 0.0
  %156 = vmatprep.subr.mxu0 0.0
  %157 = vmatpush2.msra.mxu0 0.0
  %158 = vmatprep.subr.mxu0 0.0
  %159 = vmatpush2.msra.mxu0 0.0
  %160 = vmatprep.subr.mxu0 0.0
  %161 = vmatpush2.msra.mxu0 0.0
  %162 = vmatprep.subr.mxu0 0.0
  %163 = vmatpush2.msra.mxu0 0.0
  %164 = vmatprep.subr.mxu0 0.0
  %165 = vmatpush2.msra.mxu0 0.0
  %166 = vmatprep.subr.mxu0 0.0
  %167 = vmatpush2.msra.mxu0 0.0
  %168 = vmatprep.subr.mxu0 0.0
  %169 = vmatpush2.msra.mxu0 0.0
  %170 = vmatprep.subr.mxu0 0.0
  %171 = vmatpush2.msra.mxu0 0.0
  %172 = vmatprep.subr.mxu0 0.0
  %173 = vmatpush2.msra.mxu0 0.0
  %174 = vmatprep.subr.mxu0 0.0
  %175 = vmatpush2.msra.mxu0 0.0
  %176 = vmatprep.subr.mxu0 0.0
  %177 = vmatpush2.msra.mxu0 0.0
  %178 = vmatprep.subr.mxu0 0.0
  %179 = vmatpush2.msra.mxu0 0.0
  %180 = vmatprep.subr.mxu0 0.0
  %181 = vmatpush2.msra.mxu0 0.0
  %182 = vmatprep.mubr.f32.mxu0 0.0
  %183 = vmatmul.mubr.f32.gmra.mxu0 %v71
  %v184 = vpop.f32.mrf.mxu0
  %v185 = vadd.f32 %v67, %v184
  %v186 = vpop.f32.mrf.mxu0
  %187 = vmatprep.mubr.f32.mxu0 0.0
  %188 = vmatmul.mubr.f32.gmra.mxu0 %v74
  %v189 = vpop.f32.mrf.mxu0
  %v190 = vadd.f32 %v67, %v189
  %v191 = vpop.f32.mrf.mxu0
  %192 = vmatprep.mubr.f32.mxu0 0.0
  %193 = vmatmul.mubr.f32.gmra.mxu0 %v77
  %v194 = vpop.f32.mrf.mxu0
  %v195 = vadd.f32 %v67, %v194
  %v196 = vpop.f32.mrf.mxu0
  %197 = vmatprep.mubr.f32.mxu0 0.0
  %198 = vmatmul.mubr.f32.gmra.mxu0 %v80
  %v199 = vpop.f32.mrf.mxu0
  %v200 = vadd.f32 %v67, %v199
  %v201 = vpop.f32.mrf.mxu0
  %202 = vmatprep.mubr.f32.mxu0 0.0
  %203 = vmatmul.mubr.f32.gmra.mxu0 %v83
  %v204 = vpop.f32.mrf.mxu0
  %v205 = vadd.f32 %v67, %v204
  %v206 = vpop.f32.mrf.mxu0
  %207 = vmatprep.mubr.f32.mxu0 0.0
  %208 = vmatmul.mubr.f32.gmra.mxu0 %v86
  %v209 = vpop.f32.mrf.mxu0
  %v210 = vadd.f32 %v67, %v209
  %v211 = vpop.f32.mrf.mxu0
  %212 = vmatprep.mubr.f32.mxu0 0.0
  %213 = vmatmul.mubr.f32.gmra.mxu0 %v89
  %v214 = vpop.f32.mrf.mxu0
  %v215 = vadd.f32 %v67, %v214
  %v216 = vpop.f32.mrf.mxu0
  %217 = vmatprep.mubr.f32.mxu0 0.0
  %218 = vmatmul.mubr.f32.gmra.mxu0 %v92
  %v219 = vpop.f32.mrf.mxu0
  %v220 = vadd.f32 %v67, %v219
  %v221 = vpop.f32.mrf.mxu0
  %222 = vmatprep.mubr.f32.mxu0 0.0
  %223 = vmatmul.mubr.f32.gmra.mxu0 %v95
  %v224 = vpop.f32.mrf.mxu0
  %v225 = vadd.f32 %v67, %v224
  %v226 = vpop.f32.mrf.mxu0
  %227 = vmatprep.mubr.f32.mxu0 0.0
  %228 = vmatmul.mubr.f32.gmra.mxu0 %v98
  %v229 = vpop.f32.mrf.mxu0
  %v230 = vadd.f32 %v67, %v229
  %v231 = vpop.f32.mrf.mxu0
  %232 = vmatprep.mubr.f32.mxu0 0.0
  %233 = vmatmul.mubr.f32.gmra.mxu0 %v101
  %v234 = vpop.f32.mrf.mxu0
  %v235 = vadd.f32 %v67, %v234
  %v236 = vpop.f32.mrf.mxu0
  %237 = vmatprep.mubr.f32.mxu0 0.0
  %238 = vmatmul.mubr.f32.gmra.mxu0 %v104
  %v239 = vpop.f32.mrf.mxu0
  %v240 = vadd.f32 %v67, %v239
  %v241 = vpop.f32.mrf.mxu0
  %242 = vmatprep.mubr.f32.mxu0 0.0
  %243 = vmatmul.mubr.f32.gmra.mxu0 %v107
  %v244 = vpop.f32.mrf.mxu0
  %v245 = vadd.f32 %v67, %v244
  %v246 = vpop.f32.mrf.mxu0
  %247 = vmatprep.mubr.f32.mxu0 0.0
  %248 = vmatmul.mubr.f32.gmra.mxu0 %v110
  %v249 = vpop.f32.mrf.mxu0
  %v250 = vadd.f32 %v67, %v249
  %v251 = vpop.f32.mrf.mxu0
  %252 = vmatprep.mubr.f32.mxu0 0.0
  %253 = vmatmul.mubr.f32.gmra.mxu0 %v113
  %v254 = vpop.f32.mrf.mxu0
  %v255 = vadd.f32 %v67, %v254
  %v256 = vpop.f32.mrf.mxu0
  %257 = vmatprep.mubr.f32.mxu0 0.0
  %258 = vmatmul.mubr.f32.gmra.mxu0 %v116
  %v259 = vpop.f32.mrf.mxu0
  %v260 = vadd.f32 %v67, %v259
  %v261 = vpop.f32.mrf.mxu0
  %262 = vdwg.mxu0
  %v263 = vld [vmem:[#allocation2] sm:$0xff]
  %v264 = vld [vmem:[#allocation2 + $0x8] sm:$0xff]
  %v265 = vld [vmem:[#allocation2 + $0x10] sm:$0xff]
  %v266 = vld [vmem:[#allocation2 + $0x18] sm:$0xff]
  %v267 = vld [vmem:[#allocation2 + $0x20] sm:$0xff]
  %v268 = vld [vmem:[#allocation2 + $0x28] sm:$0xff]
  %v269 = vld [vmem:[#allocation2 + $0x30] sm:$0xff]
  %v270 = vld [vmem:[#allocation2 + $0x38] sm:$0xff]
  %v271 = vld [vmem:[#allocation2 + $0x40] sm:$0xff]
  %v272 = vld [vmem:[#allocation2 + $0x48] sm:$0xff]
  %v273 = vld [vmem:[#allocation2 + $0x50] sm:$0xff]
  %v274 = vld [vmem:[#allocation2 + $0x58] sm:$0xff]
  %v275 = vld [vmem:[#allocation2 + $0x60] sm:$0xff]
  %v276 = vld [vmem:[#allocation2 + $0x68] sm:$0xff]
  %v277 = vld [vmem:[#allocation2 + $0x70] sm:$0xff]
  %v278 = vld [vmem:[#allocation2 + $0x78] sm:$0xff]
  %v279 = vld [vmem:[%s1] sm:$0xf]
  %v280 = vld [vmem:[%s1 + $0x4] sm:$0xf]
  %v281 = vld [vmem:[%s1 + $0x8] sm:$0xf]
  %v282 = vld [vmem:[%s1 + $0xc] sm:$0xf]
  %v283 = vld [vmem:[%s1 + $0x10] sm:$0xf]
  %v284 = vld [vmem:[%s1 + $0x14] sm:$0xf]
  %v285 = vld [vmem:[%s1 + $0x18] sm:$0xf]
  %v286 = vld [vmem:[%s1 + $0x1c] sm:$0xf]
  %v287 = vld [vmem:[%s1 + $0x20] sm:$0xf]
  %v288 = vld [vmem:[%s1 + $0x24] sm:$0xf]
  %v289 = vld [vmem:[%s1 + $0x28] sm:$0xf]
  %v290 = vld [vmem:[%s1 + $0x2c] sm:$0xf]
  %v291 = vld [vmem:[%s1 + $0x30] sm:$0xf]
  %v292 = vld [vmem:[%s1 + $0x34] sm:$0xf]
  %v293 = vld [vmem:[%s1 + $0x38] sm:$0xf]
  %v294 = vld [vmem:[%s1 + $0x3c] sm:$0xf]
  %v295 = vpack.c.bf16 %v190, %v185
  %v296 = vpack.c.bf16 %v200, %v195
  %v297 = vpack.c.bf16 %v210, %v205
  %v298 = vpack.c.bf16 %v220, %v215
  %v299 = vpack.c.bf16 %v230, %v225
  %v300 = vpack.c.bf16 %v240, %v235
  %v301 = vpack.c.bf16 %v250, %v245
  %v302 = vpack.c.bf16 %v260, %v255
  %v319 = vunpack.c.l.b16 %v279
  %v320 = vunpack.c.l.b16 %v280
  %v321 = vunpack.c.l.b16 %v281
  %v322 = vunpack.c.l.b16 %v282
  %v323 = vunpack.c.l.b16 %v283
  %v324 = vunpack.c.l.b16 %v284
  %v325 = vunpack.c.l.b16 %v285
  %v326 = vunpack.c.l.b16 %v286
  %v327 = vunpack.c.l.b16 %v287
  %v328 = vunpack.c.l.b16 %v288
  %v329 = vunpack.c.l.b16 %v289
  %v330 = vunpack.c.l.b16 %v290
  %v331 = vunpack.c.l.b16 %v291
  %v332 = vunpack.c.l.b16 %v292
  %v333 = vunpack.c.l.b16 %v293
  %v334 = vunpack.c.l.b16 %v294
  %v335 = vpack.c.b16 %v320, %v319
  %v336 = vpack.c.b16 %v322, %v321
  %v337 = vpack.c.b16 %v324, %v323
  %v338 = vpack.c.b16 %v326, %v325
  %v339 = vpack.c.b16 %v328, %v327
  %v340 = vpack.c.b16 %v330, %v329
  %v341 = vpack.c.b16 %v332, %v331
  %v342 = vpack.c.b16 %v334, %v333
  %351 = vmatprep.subr.bf16.mxu0 0
  %352 = vmatpush1.bf16.msra.mxu0 %v302
  %353 = vmatprep.subr.bf16.mxu0 0
  %354 = vmatpush1.bf16.msra.mxu0 %v301
  %355 = vmatprep.subr.bf16.mxu0 0
  %356 = vmatpush1.bf16.msra.mxu0 %v300
  %357 = vmatprep.subr.bf16.mxu0 0
  %358 = vmatpush1.bf16.msra.mxu0 %v299
  %359 = vmatprep.subr.bf16.mxu0 0
  %360 = vmatpush1.bf16.msra.mxu0 %v298
  %361 = vmatprep.subr.bf16.mxu0 0
  %362 = vmatpush1.bf16.msra.mxu0 %v297
  %363 = vmatprep.subr.bf16.mxu0 0
  %364 = vmatpush1.bf16.msra.mxu0 %v296
  %365 = vmatprep.subr.bf16.mxu0 0
  %366 = vmatpush1.bf16.msra.mxu0 %v295
  %367 = vmatprep.subr.bf16.mxu0 0
  %368 = vmatpush2.bf16.msra.mxu0 0
  %369 = vmatprep.subr.bf16.mxu0 0
  %370 = vmatpush2.bf16.msra.mxu0 0
  %371 = vmatprep.subr.bf16.mxu0 0
  %372 = vmatpush2.bf16.msra.mxu0 0
  %373 = vmatprep.subr.bf16.mxu0 0
  %374 = vmatpush2.bf16.msra.mxu0 0
  %375 = vmatprep.subr.bf16.mxu0 0
  %376 = vmatpush2.bf16.msra.mxu0 0
  %377 = vmatprep.subr.bf16.mxu0 0
  %378 = vmatpush2.bf16.msra.mxu0 0
  %379 = vmatprep.subr.bf16.mxu0 0
  %380 = vmatpush2.bf16.msra.mxu0 0
  %381 = vmatprep.subr.bf16.mxu0 0
  %382 = vmatpush2.bf16.msra.mxu0 0
  %383 = vmatprep.mubr.bf16.mxu0 0
  %384 = vmatmul.mubr.bf16.gmra.mxu0 %v335
  %v385 = vpop.f32.mrf.mxu0
  %v386 = vadd.f32 0.0, %v385
  %v387 = vpop.f32.mrf.mxu0
  %v388 = vpop.f32.mrf.mxu0
  %v389 = vadd.f32 0.0, %v388
  %v390 = vpop.f32.mrf.mxu0
  %391 = vmatprep.mubr.bf16.mxu0 0
  %392 = vmatmul.mubr.bf16.gmra.mxu0 %v336
  %v393 = vpop.f32.mrf.mxu0
  %v394 = vadd.f32 0.0, %v393
  %v395 = vpop.f32.mrf.mxu0
  %v396 = vpop.f32.mrf.mxu0
  %v397 = vadd.f32 0.0, %v396
  %v398 = vpop.f32.mrf.mxu0
  %399 = vmatprep.mubr.bf16.mxu0 0
  %400 = vmatmul.mubr.bf16.gmra.mxu0 %v337
  %v401 = vpop.f32.mrf.mxu0
  %v402 = vadd.f32 0.0, %v401
  %v403 = vpop.f32.mrf.mxu0
  %v404 = vpop.f32.mrf.mxu0
  %v405 = vadd.f32 0.0, %v404
  %v406 = vpop.f32.mrf.mxu0
  %407 = vmatprep.mubr.bf16.mxu0 0
  %408 = vmatmul.mubr.bf16.gmra.mxu0 %v338
  %v409 = vpop.f32.mrf.mxu0
  %v410 = vadd.f32 0.0, %v409
  %v411 = vpop.f32.mrf.mxu0
  %v412 = vpop.f32.mrf.mxu0
  %v413 = vadd.f32 0.0, %v412
  %v414 = vpop.f32.mrf.mxu0
  %415 = vmatprep.mubr.bf16.mxu0 0
  %416 = vmatmul.mubr.bf16.gmra.mxu0 %v339
  %v417 = vpop.f32.mrf.mxu0
  %v418 = vadd.f32 0.0, %v417
  %v419 = vpop.f32.mrf.mxu0
  %v420 = vpop.f32.mrf.mxu0
  %v421 = vadd.f32 0.0, %v420
  %v422 = vpop.f32.mrf.mxu0
  %423 = vmatprep.mubr.bf16.mxu0 0
  %424 = vmatmul.mubr.bf16.gmra.mxu0 %v340
  %v425 = vpop.f32.mrf.mxu0
  %v426 = vadd.f32 0.0, %v425
  %v427 = vpop.f32.mrf.mxu0
  %v428 = vpop.f32.mrf.mxu0
  %v429 = vadd.f32 0.0, %v428
  %v430 = vpop.f32.mrf.mxu0
  %431 = vmatprep.mubr.bf16.mxu0 0
  %432 = vmatmul.mubr.bf16.gmra.mxu0 %v341
  %v433 = vpop.f32.mrf.mxu0
  %v434 = vadd.f32 0.0, %v433
  %v435 = vpop.f32.mrf.mxu0
  %v436 = vpop.f32.mrf.mxu0
  %v437 = vadd.f32 0.0, %v436
  %v438 = vpop.f32.mrf.mxu0
  %439 = vmatprep.mubr.bf16.mxu0 0
  %440 = vmatmul.mubr.bf16.gmra.mxu0 %v342
  %v441 = vpop.f32.mrf.mxu0
  %v442 = vadd.f32 0.0, %v441
  %v443 = vpop.f32.mrf.mxu0
  %v444 = vpop.f32.mrf.mxu0
  %v445 = vadd.f32 0.0, %v444
  %v446 = vpop.f32.mrf.mxu0
  %447 = vdwg.mxu0
  %v448 = vadd.f32 %v263, %v386
  %v449 = vadd.f32 %v264, %v389
  %v450 = vadd.f32 %v265, %v394
  %v451 = vadd.f32 %v266, %v397
  %v452 = vadd.f32 %v267, %v402
  %v453 = vadd.f32 %v268, %v405
  %v454 = vadd.f32 %v269, %v410
  %v455 = vadd.f32 %v270, %v413
  %v456 = vadd.f32 %v271, %v418
  %v457 = vadd.f32 %v272, %v421
  %v458 = vadd.f32 %v273, %v426
  %v459 = vadd.f32 %v274, %v429
  %v460 = vadd.f32 %v275, %v434
  %v461 = vadd.f32 %v276, %v437
  %v462 = vadd.f32 %v277, %v442
  %v463 = vadd.f32 %v278, %v445
  %464 = vst.msk [vmem:[#allocation2] sm:$0xff] %vm69, %v448
  %465 = vst.msk [vmem:[#allocation2 + $0x8] sm:$0xff] %vm69, %v449
  %466 = vst.msk [vmem:[#allocation2 + $0x10] sm:$0xff] %vm69, %v450
  %467 = vst.msk [vmem:[#allocation2 + $0x18] sm:$0xff] %vm69, %v451
  %468 = vst.msk [vmem:[#allocation2 + $0x20] sm:$0xff] %vm69, %v452
  %469 = vst.msk [vmem:[#allocation2 + $0x28] sm:$0xff] %vm69, %v453
  %470 = vst.msk [vmem:[#allocation2 + $0x30] sm:$0xff] %vm69, %v454
  %471 = vst.msk [vmem:[#allocation2 + $0x38] sm:$0xff] %vm69, %v455
  %472 = vst.msk [vmem:[#allocation2 + $0x40] sm:$0xff] %vm69, %v456
  %473 = vst.msk [vmem:[#allocation2 + $0x48] sm:$0xff] %vm69, %v457
  %474 = vst.msk [vmem:[#allocation2 + $0x50] sm:$0xff] %vm69, %v458
  %475 = vst.msk [vmem:[#allocation2 + $0x58] sm:$0xff] %vm69, %v459
  %476 = vst.msk [vmem:[#allocation2 + $0x60] sm:$0xff] %vm69, %v460
  %477 = vst.msk [vmem:[#allocation2 + $0x68] sm:$0xff] %vm69, %v461
  %478 = vst.msk [vmem:[#allocation2 + $0x70] sm:$0xff] %vm69, %v462
  %479 = vst.msk [vmem:[#allocation2 + $0x78] sm:$0xff] %vm69, %v463
  // Predicated region
  $region26: #{tpu_custom_call.1} parent=0 // pred_check
    %p480 = pneg %p21
  $region27: #{tpu_custom_call.1} parent=0 // pred_check_branch
    %482 = sbr.rel (%p480) target = $region29
  $region28: #{tpu_custom_call.1} parent=0 // pred_region
    %v483 = vld [vmem:[#allocation2] sm:$0xff]
    %v484 = vld [vmem:[#allocation2 + $0x8] sm:$0xff]
    %v485 = vld [vmem:[#allocation2 + $0x10] sm:$0xff]
    %v486 = vld [vmem:[#allocation2 + $0x18] sm:$0xff]
    %v487 = vld [vmem:[#allocation2 + $0x20] sm:$0xff]
    %v488 = vld [vmem:[#allocation2 + $0x28] sm:$0xff]
    %v489 = vld [vmem:[#allocation2 + $0x30] sm:$0xff]
    %v490 = vld [vmem:[#allocation2 + $0x38] sm:$0xff]
    %v491 = vld [vmem:[#allocation2 + $0x40] sm:$0xff]
    %v492 = vld [vmem:[#allocation2 + $0x48] sm:$0xff]
    %v493 = vld [vmem:[#allocation2 + $0x50] sm:$0xff]
    %v494 = vld [vmem:[#allocation2 + $0x58] sm:$0xff]
    %v495 = vld [vmem:[#allocation2 + $0x60] sm:$0xff]
    %v496 = vld [vmem:[#allocation2 + $0x68] sm:$0xff]
    %v497 = vld [vmem:[#allocation2 + $0x70] sm:$0xff]
    %v498 = vld [vmem:[#allocation2 + $0x78] sm:$0xff]
    %v499 = vld [vmem:[%s4] sm:$0x1]
    %v501 = vlaneseq
    %v502 = vshrl.u32 %v501, 7
    %v503 = vsub.s32 0, %v502
    %v504 = vrot.slane %v499, %v503
    %v506 = vadd.f32 %v483, %v504
    %v507 = vadd.f32 %v484, %v504
    %v508 = vadd.f32 %v485, %v504
    %v509 = vadd.f32 %v486, %v504
    %v510 = vadd.f32 %v487, %v504
    %v511 = vadd.f32 %v488, %v504
    %v512 = vadd.f32 %v489, %v504
    %v513 = vadd.f32 %v490, %v504
    %v514 = vadd.f32 %v491, %v504
    %v515 = vadd.f32 %v492, %v504
    %v516 = vadd.f32 %v493, %v504
    %v517 = vadd.f32 %v494, %v504
    %v518 = vadd.f32 %v495, %v504
    %v519 = vadd.f32 %v496, %v504
    %v520 = vadd.f32 %v497, %v504
    %v521 = vadd.f32 %v498, %v504
    %v522 = vmax.f32 %v506, 0.0
    %v523 = vmax.f32 %v507, 0.0
    %v524 = vmax.f32 %v508, 0.0
    %v525 = vmax.f32 %v509, 0.0
    %v526 = vmax.f32 %v510, 0.0
    %v527 = vmax.f32 %v511, 0.0
    %v528 = vmax.f32 %v512, 0.0
    %v529 = vmax.f32 %v513, 0.0
    %v530 = vmax.f32 %v514, 0.0
    %v531 = vmax.f32 %v515, 0.0
    %v532 = vmax.f32 %v516, 0.0
    %v533 = vmax.f32 %v517, 0.0
    %v534 = vmax.f32 %v518, 0.0
    %v535 = vmax.f32 %v519, 0.0
    %v536 = vmax.f32 %v520, 0.0
    %v537 = vmax.f32 %v521, 0.0
    %538 = vst.msk [vmem:[%s5] sm:$0xff] %vm69, %v522
    %539 = vst.msk [vmem:[%s5 + $0x8] sm:$0xff] %vm69, %v523
    %540 = vst.msk [vmem:[%s5 + $0x10] sm:$0xff] %vm69, %v524
    %541 = vst.msk [vmem:[%s5 + $0x18] sm:$0xff] %vm69, %v525
    %542 = vst.msk [vmem:[%s5 + $0x20] sm:$0xff] %vm69, %v526
    %543 = vst.msk [vmem:[%s5 + $0x28] sm:$0xff] %vm69, %v527
    %544 = vst.msk [vmem:[%s5 + $0x30] sm:$0xff] %vm69, %v528
    %545 = vst.msk [vmem:[%s5 + $0x38] sm:$0xff] %vm69, %v529
    %546 = vst.msk [vmem:[%s5 + $0x40] sm:$0xff] %vm69, %v530
    %547 = vst.msk [vmem:[%s5 + $0x48] sm:$0xff] %vm69, %v531
    %548 = vst.msk [vmem:[%s5 + $0x50] sm:$0xff] %vm69, %v532
    %549 = vst.msk [vmem:[%s5 + $0x58] sm:$0xff] %vm69, %v533
    %550 = vst.msk [vmem:[%s5 + $0x60] sm:$0xff] %vm69, %v534
    %551 = vst.msk [vmem:[%s5 + $0x68] sm:$0xff] %vm69, %v535
    %552 = vst.msk [vmem:[%s5 + $0x70] sm:$0xff] %vm69, %v536
    %553 = vst.msk [vmem:[%s5 + $0x78] sm:$0xff] %vm69, %v537
  $region29: #{tpu_custom_call.1} parent=0 // pred_fallthru
    _
  // Predicated region
  $region30: #{tpu_custom_call.1} parent=0 // pred_check
    _
  $region31: #{tpu_custom_call.1} parent=0 // pred_check_branch
    %555 = sbr.rel (0) target = $region33
  $region32: #{tpu_custom_call.1} parent=0 // pred_region
    _
  $region33: #{tpu_custom_call.1} parent=0 // pred_fallthru
    _
  // Predicated region
  $region34: #{tpu_custom_call.1} parent=0 // pred_check
    _
  $region35: #{tpu_custom_call.1} parent=0 // pred_check_branch
    %557 = sbr.rel (0) target = $region37
  $region36: #{tpu_custom_call.1} parent=0 // pred_region
    _
  $region37: #{tpu_custom_call.1} parent=0 // pred_fallthru
    _

</llo_original>
